<compile_context>
chip_gen: v5e
topology: v5e:2x2
jax: 0.10.0
libtpu: 0.0.40
codegen_flags: <defaults>
</compile_context>

<pallas_src>
import jax
import jax.numpy as jnp
from jax.experimental import pallas as pl
from jax.experimental.pallas import tpu as pltpu  # noqa: F401  (TPU backend)


def _identity_copy_kernel(y_ref, o_ref):
    # y_ref / o_ref: (N, 10) VMEM tiles of identical shape & dtype.
    o_ref[...] = y_ref[...]


def view_size_from_other_tensor(x: jax.Array, y: jax.Array) -> jax.Array:
    # Target leading dim comes from x's (static) shape, exactly like
    # torch.ops.aten.size(x, 1) in the traced e2e module.
    n = x.shape[1]
    d = y.shape[-1]  # 10

    # Metadata-only collapse (1, N, 10) -> (N, 10); done in the wrapper so the
    # kernel never has to repack sublanes for an in-kernel reshape.
    y2 = jnp.reshape(y, (n, d))

    return pl.pallas_call(
        _identity_copy_kernel,
        out_shape=jax.ShapeDtypeStruct((n, d), y.dtype),
        # Tiny shapes: full-array blocks (block_shape == array dims is always
        # legal regardless of the (8,128) tiling constraint).
        in_specs=[pl.BlockSpec((n, d), lambda: (0, 0))],
        out_specs=pl.BlockSpec((n, d), lambda: (0, 0)),
        # Shapes/dtypes match after hoisting the reshape, so alias the output
        # onto the input buffer: no output allocation, no writeback DMA.
        input_output_aliases={0: 0},
    )(y2)


if __name__ == "__main__":
    key = jax.random.PRNGKey(0)
    kx, ky = jax.random.split(key)

    N = 8  # small example size consistent with the annotated shapes [1, -1]
    x = jax.random.normal(kx, (1, N), dtype=jnp.float32)
    y = jax.random.normal(ky, (1, N, 10), dtype=jnp.float32)

    out = view_size_from_other_tensor(x, y)
    jax.block_until_ready(out)

    # Reference semantics of aten.view(y, (size(x, 1), 10)).
    ref = jnp.reshape(y, (N, 10))
    assert out.shape == (N, 10), out.shape
    assert out.dtype == jnp.float32, out.dtype
    assert jnp.array_equal(out, ref), "mismatch vs reference view/reshape"

    print("KERNEL_OK")
</pallas_src>

<mosaic_0001>
module attributes {stable_mosaic.version = 11 : i64} {
  func.func @_identity_copy_kernel(%arg0: memref<8x10xf32, #tpu.memory_space<vmem>>, %arg1: memref<8x10xf32, #tpu.memory_space<vmem>>) attributes {dimension_semantics = [], scalar_prefetch = 0 : i64, scratch_operands = 0 : i64, tpu.core_type = #tpu.core_type<tc>} {
    %c0 = arith.constant 0 : index
    %c0_0 = arith.constant 0 : index
    %0 = vector.load %arg0[%c0, %c0_0] : memref<8x10xf32, #tpu.memory_space<vmem>>, vector<8x10xf32>
    %c0_1 = arith.constant 0 : index
    %c0_2 = arith.constant 0 : index
    %1 = vector.load %arg1[%c0_1, %c0_2] : memref<8x10xf32, #tpu.memory_space<vmem>>, vector<8x10xf32>
    tpu.vector_store %arg1[%c0_1, %c0_2], %0 {strides = array<i32>} : memref<8x10xf32, #tpu.memory_space<vmem>>, vector<8x10xf32>,
    return
  }
}

</mosaic_0001>

<llo_original>
// kernel: tpu_custom_call.1
$region0: #{tpu_custom_call.1}
  #allocation0 [shape = 'u32[]', space=smem, size = 0x4, offset = 0x4, fixed_abs, tag = 'smem constant byte address 0x4 - core index']
  #allocation1 [shape = 'u32[72,128]{1,0:T(1,128)}', space=vmem, size = 0x9000, scoped, tag = 'internal scratch']
  %s0 = inlined_call_operand.hbm [shape: f32[8,10], index: 0, kind: input, shape index: {}, may-alias: {0,1}]
  %s1 = inlined_call_operand.hbm [shape: f32[8,10], index: 1, kind: output, shape index: {}, may-alias: {0,1}]
  %s2 = sld [smem:[#allocation0]]
  $region18: #{tpu_custom_call.1} parent=0
    _
  %s4 = ssub.s32 1, %s2
  %s5 = scalar_select 0, %s4, %s2
  $region1: #{tpu_custom_call.1} parent=0
    #allocation2 [shape = 'u8[4096]{0}', space=vmem, size = 0x1000, scoped, tag = 'input window, operand 0, single buffered']
    #allocation3 [shape = 's32[1]{0}', space=sflag, size = 0x4, scoped, tag = 'scoped memory for tpu_custom_call.1']
    #allocation4 [shape = 's32[1]{0}', space=sflag, size = 0x4, scoped, tag = 'scoped memory for tpu_custom_call.1']
    #allocation5 [shape = 'u8[4096]{0}', space=vmem, size = 0x1000, scoped, tag = 'output window, operand 0, single buffered']
    %6 = vsyncpa [#allocation3], 0
    %7 = vsyncpa [#allocation4], 0
    // Predicated region
    $region2: #{tpu_custom_call.1} parent=1 // pred_check
      _
    $region3: #{tpu_custom_call.1} parent=1 // pred_check_branch
      %9 = sbr.rel (0) target = $region5
    $region4: #{tpu_custom_call.1} parent=1 // pred_region
      %11 = vsyncadd [#allocation3], 0
      %s13 = sshll.u32 %s0, 4
      %s14 = int_to_ptr.hbm [resolvable:$true] %s13
      %s15 = sshll.u32 [#allocation2], 4
      %s16 = int_to_ptr.vmem [resolvable:$true] %s15
      %18 = dma.hbm_to_vmem [thread:$0]  %s14, 128, %s16, [#allocation3]
    $region5: #{tpu_custom_call.1} parent=1 // pred_fallthru
      _
    // Predicated region
    $region6: #{tpu_custom_call.1} parent=1 // pred_check
      _
    $region7: #{tpu_custom_call.1} parent=1 // pred_check_branch
      %20 = sbr.rel (0) target = $region9
    $region8: #{tpu_custom_call.1} parent=1 // pred_region
      %22 = dma.done [#allocation3], 128
    $region9: #{tpu_custom_call.1} parent=1 // pred_fallthru
      _
    %v23 = vld [vmem:[#allocation2] sm:$0xff]
    %vm24 = vcmask 80896
    %25 = vst.msk [vmem:[#allocation5] sm:$0xff] %vm24, %v23
    // Predicated region
    $region10: #{tpu_custom_call.1} parent=1 // pred_check
      _
    $region11: #{tpu_custom_call.1} parent=1 // pred_check_branch
      %27 = sbr.rel (0) target = $region13
    $region12: #{tpu_custom_call.1} parent=1 // pred_region
      %29 = vsyncadd [#allocation4], 0
      %s31 = sshll.u32 [#allocation5], 4
      %s32 = int_to_ptr.vmem [resolvable:$true] %s31
      %s33 = sshll.u32 %s1, 4
      %s34 = int_to_ptr.hbm [resolvable:$true] %s33
      %36 = dma.vmem_to_hbm [thread:$0]  %s32, 128, %s34, [#allocation4]
    $region13: #{tpu_custom_call.1} parent=1 // pred_fallthru
      _
    // Predicated region
    $region14: #{tpu_custom_call.1} parent=1 // pred_check
      _
    $region15: #{tpu_custom_call.1} parent=1 // pred_check_branch
      %38 = sbr.rel (0) target = $region17
    $region16: #{tpu_custom_call.1} parent=1 // pred_region
      %40 = dma.done [#allocation4], 128
    $region17: #{tpu_custom_call.1} parent=1 // pred_fallthru
      _
    %41 = vsyncpa [#allocation3], 1
    %42 = vsyncpa [#allocation4], 1

</llo_original>
